<compile_context>
chip_gen: v7x
topology: tpu7x:2x2x1
jax: 0.10.0
libtpu: 0.0.40
codegen_flags: <defaults>
</compile_context>

<pallas_src>
import functools

import jax
import jax.numpy as jnp
from jax.experimental import pallas as pl
from jax.experimental.pallas import tpu as pltpu


def _round_up(n, m):
    return ((n + m - 1) // m) * m


def _pad2(a, rows, cols):
    r, c = a.shape
    if r == rows and c == cols:
        return a
    return jnp.pad(a, ((0, rows - r), (0, cols - c)))


def _tpu_generation():
    """Best-effort TPU generation detection (5 / 6 / 7)."""
    try:
        kind = jax.devices()[0].device_kind.lower()
    except Exception:
        return 6
    if "v7" in kind:
        return 7
    if "v6" in kind:
        return 6
    if "v5" in kind or "lite" in kind:
        return 5
    return 6


def _vmem_capacity_bytes():
    try:
        return int(pltpu.get_tpu_info().vmem_capacity_bytes)
    except Exception:
        return 64 << 20  # conservative: v7x per-TensorCore VMEM


# ---------------------------------------------------------------------------
# Kernel
# ---------------------------------------------------------------------------
def branchnet_kernel(x_ref, w1_ref, b1_ref, w2_ref, b2_ref, w3_ref, b3_ref,
                     o_ref, *, tanh_dtype):
    """Fused 3-layer MLP forward for one batch tile.

    x arrives in its source dtype (f32) and is cast to bf16 right after the
    load (hidden under the DMA); MXU matmuls accumulate in f32; the bias-add
    is f32 and tanh runs in `tanh_dtype` (bf16 on v6e/v7x, f32 on v5e).
    """
    x = x_ref[...].astype(jnp.bfloat16)
    h1 = jnp.dot(x, w1_ref[...], preferred_element_type=jnp.float32)
    h1 = jnp.tanh((h1 + b1_ref[...]).astype(tanh_dtype)).astype(jnp.bfloat16)
    h2 = jnp.dot(h1, w2_ref[...], preferred_element_type=jnp.float32)
    h2 = jnp.tanh((h2 + b2_ref[...]).astype(tanh_dtype)).astype(jnp.bfloat16)
    out = jnp.dot(h2, w3_ref[...], preferred_element_type=jnp.float32)
    out = out + b3_ref[...]
    o_ref[...] = out.astype(o_ref.dtype)


# ---------------------------------------------------------------------------
# One-time parameter prep (hoisted out of the per-call path)
# ---------------------------------------------------------------------------
def prepare_params(params):
    """Pad hidden/output feature dims to 128 lanes, cast weights to bf16
    (MXU-native) and biases to f32 row vectors. Call once; reuse the result
    across forward calls so per-step HBM traffic is only x + weights + out.
    The zero padding is mathematically inert."""
    w1, w2, w3 = params["w1"], params["w2"], params["w3"]
    b1 = jnp.asarray(params["b1"]).reshape(1, -1)
    b2 = jnp.asarray(params["b2"]).reshape(1, -1)
    b3 = jnp.asarray(params["b3"]).reshape(1, -1)

    d_in, hidden = w1.shape
    d_out = w3.shape[1]
    h_p = _round_up(hidden, 128)
    d_out_p = _round_up(d_out, 128)

    return {
        "_prepped": True,
        "input_dim": int(d_in),
        "hidden_padded": int(h_p),
        "output_dim": int(d_out),
        "output_padded": int(d_out_p),
        "w1": _pad2(w1, d_in, h_p).astype(jnp.bfloat16),
        "b1": _pad2(b1, 1, h_p).astype(jnp.float32),
        "w2": _pad2(w2, h_p, h_p).astype(jnp.bfloat16),
        "b2": _pad2(b2, 1, h_p).astype(jnp.float32),
        "w3": _pad2(w3, h_p, d_out_p).astype(jnp.bfloat16),
        "b3": _pad2(b3, 1, d_out_p).astype(jnp.float32),
    }


# ---------------------------------------------------------------------------
# pallas_call wrapper
# ---------------------------------------------------------------------------
@functools.partial(
    jax.jit,
    static_argnames=("tile_b", "out_dtype", "tanh_dtype",
                     "single_buffer_weights", "vmem_limit"))
def _forward_impl(x, w1, b1, w2, b2, w3, b3, *, tile_b, out_dtype, tanh_dtype,
                  single_buffer_weights, vmem_limit):
    B, d_in = x.shape
    h_p = w1.shape[1]
    d_out_p = w3.shape[1]
    n_tiles = pl.cdiv(B, tile_b)

    if single_buffer_weights:
        # Constant index_map => block never changes; one VMEM buffer suffices.
        def const_spec(shape):
            return pl.BlockSpec(shape, lambda i: (0, 0),
                                pipeline_mode=pl.Buffered(1))
    else:
        def const_spec(shape):
            return pl.BlockSpec(shape, lambda i: (0, 0))

    in_specs = [
        pl.BlockSpec((tile_b, d_in), lambda i: (i, 0)),   # x tile (f32)
        const_spec((d_in, h_p)),                          # w1 (VMEM-resident)
        const_spec((1, h_p)),                             # b1
        const_spec((h_p, h_p)),                           # w2
        const_spec((1, h_p)),                             # b2
        const_spec((h_p, d_out_p)),                       # w3
        const_spec((1, d_out_p)),                         # b3
    ]
    out_spec = pl.BlockSpec((tile_b, d_out_p), lambda i: (i, 0))

    out_itemsize = jnp.dtype(out_dtype).itemsize
    cost = pl.CostEstimate(
        flops=2 * B * (d_in * h_p + h_p * h_p + h_p * d_out_p),
        transcendentals=2 * B * h_p,
        bytes_accessed=(x.size * x.dtype.itemsize
                        + (w1.size + w2.size + w3.size) * 2
                        + (b1.size + b2.size + b3.size) * 4
                        + B * d_out_p * out_itemsize),
    )

    kernel = functools.partial(branchnet_kernel, tanh_dtype=tanh_dtype)
    return pl.pallas_call(
        kernel,
        out_shape=jax.ShapeDtypeStruct((B, d_out_p), out_dtype),
        grid=(n_tiles,),
        in_specs=in_specs,
        out_specs=out_spec,
        compiler_params=pltpu.CompilerParams(
            dimension_semantics=("parallel",),
            vmem_limit_bytes=vmem_limit),
        cost_estimate=cost,
    )(x, w1, b1, w2, b2, w3, b3)


_SINGLE_BUFFER_OK = hasattr(pl, "Buffered")


def branchnet_forward(x, params, *, block_b=None, out_dtype=None,
                      return_padded=False):
    """BranchNet forward: Linear -> Tanh -> Linear -> Tanh -> Linear.

    x:      [B, input_dim] (f32)
    params: raw dict (w1/b1/w2/b2/w3/b3 with `x @ W + b` layout) or the result
            of prepare_params() (preferred: weights are padded/cast only once).
    out_dtype:      defaults to x.dtype (f32, matches the PyTorch module);
                    pass jnp.bfloat16 to halve output writeback bytes.
    return_padded:  return the lane-padded [B, output_padded] result and skip
                    the post-call column slice.
    """
    global _SINGLE_BUFFER_OK

    p = params if params.get("_prepped", False) else prepare_params(params)
    d_in = p["input_dim"]
    h_p = p["hidden_padded"]
    d_out = p["output_dim"]
    d_out_p = p["output_padded"]

    B = x.shape[0]
    assert x.shape[1] == d_in, "x feature dim does not match params"

    gen = _tpu_generation()
    out_dtype = jnp.dtype(x.dtype if out_dtype is None else out_dtype)
    tanh_dtype = jnp.float32 if gen <= 5 else jnp.bfloat16  # bf16 EUP on v6e/v7x

    # Batch tile: multiple of 8 sublanes; big on v5e/v6e (HBM roofline),
    # smaller on v7x and shrunk so both v7x TensorCores get grid steps.
    if block_b is None:
        block_b = 256 if gen >= 7 else 512
    min_tiles = 4 if gen >= 7 else 1
    tile_b = min(_round_up(block_b, 8), _round_up(B, 8))
    while tile_b > 8 and pl.cdiv(B, tile_b) < min_tiles:
        tile_b = max(8, _round_up(tile_b // 2, 8))

    # VMEM budget: resident weights (single-buffered) + double-buffered
    # x/out tiles + f32 intermediates, clamped to the real chip VMEM.
    vmem_cap = _vmem_capacity_bytes()
    w_bytes = (d_in * h_p + h_p * h_p + h_p * d_out_p) * 2          # bf16
    bias_bytes = (2 * h_p + d_out_p) * 4
    io_bytes = 2 * tile_b * (d_in * x.dtype.itemsize
                             + d_out_p * out_dtype.itemsize)
    interm_bytes = tile_b * (2 * d_in + 3 * 4 * h_p)
    wb_mult = 1 if _SINGLE_BUFFER_OK else 2
    need = wb_mult * (w_bytes + bias_bytes) + io_bytes + interm_bytes
    vmem_limit = int(min(max(need * 5 // 4 + (2 << 20), 16 << 20),
                         vmem_cap - (8 << 20)))

    # Scalability guard: if the weights cannot stay VMEM-resident, do not
    # compile a kernel that would VMEM-OOM; use plain XLA instead.
    # TODO(synk): add a hidden-dim (K/N) tiled Pallas variant with an f32
    # accumulator scratch for very large hidden_dim instead of this fallback.
    if w_bytes + bias_bytes > int(0.6 * (vmem_cap - (8 << 20))):
        h1 = jnp.tanh(x @ p["w1"].astype(jnp.float32) + p["b1"])
        h2 = jnp.tanh(h1 @ p["w2"].astype(jnp.float32) + p["b2"])
        out_p = (h2 @ p["w3"].astype(jnp.float32) + p["b3"]).astype(out_dtype)
    else:
        args = (x, p["w1"], p["b1"], p["w2"], p["b2"], p["w3"], p["b3"])
        kwargs = dict(tile_b=tile_b, out_dtype=out_dtype,
                      tanh_dtype=tanh_dtype, vmem_limit=vmem_limit)
        out_p = None
        if _SINGLE_BUFFER_OK:
            try:
                out_p = _forward_impl(*args, single_buffer_weights=True,
                                      **kwargs)
            except Exception:
                _SINGLE_BUFFER_OK = False   # retry with default double-buffering
        if out_p is None:
            out_p = _forward_impl(*args, single_buffer_weights=False, **kwargs)

    if return_padded:
        return out_p
    return out_p[:, :d_out]


# ---------------------------------------------------------------------------
# Init / reference / test
# ---------------------------------------------------------------------------
def init_params(key, input_dim, hidden_dim, output_dim):
    """Deterministic parameter init (uniform like PyTorch's default Linear)."""
    keys = jax.random.split(key, 6)

    def linear_init(kw, kb, fan_in, fan_out):
        bound = 1.0 / jnp.sqrt(fan_in)
        w = jax.random.uniform(kw, (fan_in, fan_out), jnp.float32,
                               -bound, bound)
        b = jax.random.uniform(kb, (1, fan_out), jnp.float32, -bound, bound)
        return w, b

    w1, b1 = linear_init(keys[0], keys[1], input_dim, hidden_dim)
    w2, b2 = linear_init(keys[2], keys[3], hidden_dim, hidden_dim)
    w3, b3 = linear_init(keys[4], keys[5], hidden_dim, output_dim)
    return {"w1": w1, "b1": b1, "w2": w2, "b2": b2, "w3": w3, "b3": b3}


def branchnet_reference(x, params):
    """Pure-JAX f32 reference for correctness checking."""
    h1 = jnp.tanh(x @ params["w1"] + params["b1"])
    h2 = jnp.tanh(h1 @ params["w2"] + params["b2"])
    return h2 @ params["w3"] + params["b3"]


if __name__ == "__main__":
    # Small shapes consistent with the module's forward: x is [batch, input_dim].
    batch, input_dim, hidden_dim, output_dim = 8, 16, 32, 8

    key = jax.random.PRNGKey(0)
    k_x, k_p = jax.random.split(key)
    x = jax.random.normal(k_x, (batch, input_dim), jnp.float32)
    params = init_params(k_p, input_dim, hidden_dim, output_dim)

    prepped = prepare_params(params)          # one-time weight pad/cast
    out = branchnet_forward(x, prepped)
    out = jax.block_until_ready(out)

    ref = branchnet_reference(x, params)
    assert out.shape == (batch, output_dim)
    # bf16 weights (and bf16 tanh on v6e/v7x) with f32 accumulation.
    assert jnp.allclose(out, ref, atol=5e-2, rtol=5e-2), "mismatch vs reference"

    print("KERNEL_OK")
</pallas_src>

<mosaic_0001>
module attributes {stable_mosaic.version = 11 : i64} {
  func.func @branchnet_kernel(%arg0: i32, %arg1: memref<8x16xf32, #tpu.memory_space<vmem>>, %arg2: memref<16x128xbf16, #tpu.memory_space<vmem>>, %arg3: memref<1x128xf32, #tpu.memory_space<vmem>>, %arg4: memref<128x128xbf16, #tpu.memory_space<vmem>>, %arg5: memref<1x128xf32, #tpu.memory_space<vmem>>, %arg6: memref<128x128xbf16, #tpu.memory_space<vmem>>, %arg7: memref<1x128xf32, #tpu.memory_space<vmem>>, %arg8: memref<8x128xf32, #tpu.memory_space<vmem>>) attributes {dimension_semantics = [#tpu.dimension_semantics<parallel>], iteration_bounds = array<i64: 1>, scalar_prefetch = 0 : i64, scratch_operands = 0 : i64, tpu.core_type = #tpu.core_type<tc>, window_params = [{transform_indices = @transform_0, window_bounds = array<i64: 8, 16>}, {pipeline_mode = #tpu.pipeline_mode<synchronous>, transform_indices = @transform_1, window_bounds = array<i64: 16, 128>}, {pipeline_mode = #tpu.pipeline_mode<synchronous>, transform_indices = @transform_2, window_bounds = array<i64: 1, 128>}, {pipeline_mode = #tpu.pipeline_mode<synchronous>, transform_indices = @transform_3, window_bounds = array<i64: 128, 128>}, {pipeline_mode = #tpu.pipeline_mode<synchronous>, transform_indices = @transform_4, window_bounds = array<i64: 1, 128>}, {pipeline_mode = #tpu.pipeline_mode<synchronous>, transform_indices = @transform_5, window_bounds = array<i64: 128, 128>}, {pipeline_mode = #tpu.pipeline_mode<synchronous>, transform_indices = @transform_6, window_bounds = array<i64: 1, 128>}, {transform_indices = @transform_7, window_bounds = array<i64: 8, 128>}]} {
    %c0 = arith.constant 0 : index
    %c0_0 = arith.constant 0 : index
    %0 = vector.load %arg1[%c0, %c0_0] : memref<8x16xf32, #tpu.memory_space<vmem>>, vector<8x16xf32>
    %1 = arith.truncf %0 : vector<8x16xf32> to vector<8x16xbf16>
    %c0_1 = arith.constant 0 : index
    %c0_2 = arith.constant 0 : index
    %2 = vector.load %arg2[%c0_1, %c0_2] : memref<16x128xbf16, #tpu.memory_space<vmem>>, vector<16x128xbf16>
    %cst = arith.constant dense<0.000000e+00> : vector<8x128xf32>
    %3 = tpu.matmul %1, %2, %cst {dimension_numbers = #tpu.dot_dimension_numbers<[1], [0], [0], [1], [0, 0, 1, 1], [], []>} : vector<8x16xbf16>, vector<16x128xbf16>, vector<8x128xf32> -> vector<8x128xf32>
    %c0_3 = arith.constant 0 : index
    %c0_4 = arith.constant 0 : index
    %4 = vector.load %arg3[%c0_3, %c0_4] : memref<1x128xf32, #tpu.memory_space<vmem>>, vector<1x128xf32>
    %5 = vector.broadcast %4 : vector<1x128xf32> to vector<8x128xf32>
    %6 = arith.addf %3, %5 : vector<8x128xf32>
    %7 = arith.truncf %6 : vector<8x128xf32> to vector<8x128xbf16>
    %8 = math.tanh %7 : vector<8x128xbf16>
    %c0_5 = arith.constant 0 : index
    %c0_6 = arith.constant 0 : index
    %9 = vector.load %arg4[%c0_5, %c0_6] : memref<128x128xbf16, #tpu.memory_space<vmem>>, vector<128x128xbf16>
    %cst_7 = arith.constant dense<0.000000e+00> : vector<8x128xf32>
    %10 = tpu.matmul %8, %9, %cst_7 {dimension_numbers = #tpu.dot_dimension_numbers<[1], [0], [0], [1], [0, 0, 1, 1], [], []>} : vector<8x128xbf16>, vector<128x128xbf16>, vector<8x128xf32> -> vector<8x128xf32>
    %c0_8 = arith.constant 0 : index
    %c0_9 = arith.constant 0 : index
    %11 = vector.load %arg5[%c0_8, %c0_9] : memref<1x128xf32, #tpu.memory_space<vmem>>, vector<1x128xf32>
    %12 = vector.broadcast %11 : vector<1x128xf32> to vector<8x128xf32>
    %13 = arith.addf %10, %12 : vector<8x128xf32>
    %14 = arith.truncf %13 : vector<8x128xf32> to vector<8x128xbf16>
    %15 = math.tanh %14 : vector<8x128xbf16>
    %c0_10 = arith.constant 0 : index
    %c0_11 = arith.constant 0 : index
    %16 = vector.load %arg6[%c0_10, %c0_11] : memref<128x128xbf16, #tpu.memory_space<vmem>>, vector<128x128xbf16>
    %cst_12 = arith.constant dense<0.000000e+00> : vector<8x128xf32>
    %17 = tpu.matmul %15, %16, %cst_12 {dimension_numbers = #tpu.dot_dimension_numbers<[1], [0], [0], [1], [0, 0, 1, 1], [], []>} : vector<8x128xbf16>, vector<128x128xbf16>, vector<8x128xf32> -> vector<8x128xf32>
    %c0_13 = arith.constant 0 : index
    %c0_14 = arith.constant 0 : index
    %18 = vector.load %arg7[%c0_13, %c0_14] : memref<1x128xf32, #tpu.memory_space<vmem>>, vector<1x128xf32>
    %19 = vector.broadcast %18 : vector<1x128xf32> to vector<8x128xf32>
    %20 = arith.addf %17, %19 : vector<8x128xf32>
    %c0_15 = arith.constant 0 : index
    %c0_16 = arith.constant 0 : index
    %21 = vector.load %arg8[%c0_15, %c0_16] : memref<8x128xf32, #tpu.memory_space<vmem>>, vector<8x128xf32>
    tpu.vector_store %arg8[%c0_15, %c0_16], %20 {strides = array<i32>} : memref<8x128xf32, #tpu.memory_space<vmem>>, vector<8x128xf32>,
    return
  }
  func.func @transform_0(%arg0: i32) -> (i32, i32) {
    %c0_i32 = arith.constant 0 : i32
    %c0_i32_0 = arith.constant 0 : i32
    return %arg0, %c0_i32 : i32, i32
  }
  func.func @transform_1(%arg0: i32) -> (i32, i32) {
    %c0_i32 = arith.constant 0 : i32
    %c0_i32_0 = arith.constant 0 : i32
    %c0_i32_1 = arith.constant 0 : i32
    return %c0_i32, %c0_i32_0 : i32, i32
  }
  func.func @transform_2(%arg0: i32) -> (i32, i32) {
    %c0_i32 = arith.constant 0 : i32
    %c0_i32_0 = arith.constant 0 : i32
    %c0_i32_1 = arith.constant 0 : i32
    return %c0_i32, %c0_i32_0 : i32, i32
  }
  func.func @transform_3(%arg0: i32) -> (i32, i32) {
    %c0_i32 = arith.constant 0 : i32
    %c0_i32_0 = arith.constant 0 : i32
    %c0_i32_1 = arith.constant 0 : i32
    return %c0_i32, %c0_i32_0 : i32, i32
  }
  func.func @transform_4(%arg0: i32) -> (i32, i32) {
    %c0_i32 = arith.constant 0 : i32
    %c0_i32_0 = arith.constant 0 : i32
    %c0_i32_1 = arith.constant 0 : i32
    return %c0_i32, %c0_i32_0 : i32, i32
  }
  func.func @transform_5(%arg0: i32) -> (i32, i32) {
    %c0_i32 = arith.constant 0 : i32
    %c0_i32_0 = arith.constant 0 : i32
    %c0_i32_1 = arith.constant 0 : i32
    return %c0_i32, %c0_i32_0 : i32, i32
  }
  func.func @transform_6(%arg0: i32) -> (i32, i32) {
    %c0_i32 = arith.constant 0 : i32
    %c0_i32_0 = arith.constant 0 : i32
    %c0_i32_1 = arith.constant 0 : i32
    return %c0_i32, %c0_i32_0 : i32, i32
  }
  func.func @transform_7(%arg0: i32) -> (i32, i32) {
    %c0_i32 = arith.constant 0 : i32
    %c0_i32_0 = arith.constant 0 : i32
    return %arg0, %c0_i32 : i32, i32
  }
}

module attributes {stable_mosaic.version = 11 : i64} {
  func.func @branchnet_kernel(%arg0: i32, %arg1: memref<8x16xf32, #tpu.memory_space<vmem>>, %arg2: memref<16x128xbf16, #tpu.memory_space<vmem>>, %arg3: memref<1x128xf32, #tpu.memory_space<vmem>>, %arg4: memref<128x128xbf16, #tpu.memory_space<vmem>>, %arg5: memref<1x128xf32, #tpu.memory_space<vmem>>, %arg6: memref<128x128xbf16, #tpu.memory_space<vmem>>, %arg7: memref<1x128xf32, #tpu.memory_space<vmem>>, %arg8: memref<8x128xf32, #tpu.memory_space<vmem>>) attributes {dimension_semantics = [#tpu.dimension_semantics<parallel>], iteration_bounds = array<i64: 1>, scalar_prefetch = 0 : i64, scratch_operands = 0 : i64, tpu.core_type = #tpu.core_type<tc>, window_params = [{transform_indices = @transform_0, window_bounds = array<i64: 8, 16>}, {pipeline_mode = #tpu.pipeline_mode<synchronous>, transform_indices = @transform_1, window_bounds = array<i64: 16, 128>}, {pipeline_mode = #tpu.pipeline_mode<synchronous>, transform_indices = @transform_2, window_bounds = array<i64: 1, 128>}, {pipeline_mode = #tpu.pipeline_mode<synchronous>, transform_indices = @transform_3, window_bounds = array<i64: 128, 128>}, {pipeline_mode = #tpu.pipeline_mode<synchronous>, transform_indices = @transform_4, window_bounds = array<i64: 1, 128>}, {pipeline_mode = #tpu.pipeline_mode<synchronous>, transform_indices = @transform_5, window_bounds = array<i64: 128, 128>}, {pipeline_mode = #tpu.pipeline_mode<synchronous>, transform_indices = @transform_6, window_bounds = array<i64: 1, 128>}, {transform_indices = @transform_7, window_bounds = array<i64: 8, 128>}]} {
    %c0 = arith.constant 0 : index
    %c0_0 = arith.constant 0 : index
    %0 = vector.load %arg1[%c0, %c0_0] : memref<8x16xf32, #tpu.memory_space<vmem>>, vector<8x16xf32>
    %1 = arith.truncf %0 : vector<8x16xf32> to vector<8x16xbf16>
    %c0_1 = arith.constant 0 : index
    %c0_2 = arith.constant 0 : index
    %2 = vector.load %arg2[%c0_1, %c0_2] : memref<16x128xbf16, #tpu.memory_space<vmem>>, vector<16x128xbf16>
    %cst = arith.constant dense<0.000000e+00> : vector<8x128xf32>
    %3 = tpu.matmul %1, %2, %cst {dimension_numbers = #tpu.dot_dimension_numbers<[1], [0], [0], [1], [0, 0, 1, 1], [], []>} : vector<8x16xbf16>, vector<16x128xbf16>, vector<8x128xf32> -> vector<8x128xf32>
    %c0_3 = arith.constant 0 : index
    %c0_4 = arith.constant 0 : index
    %4 = vector.load %arg3[%c0_3, %c0_4] : memref<1x128xf32, #tpu.memory_space<vmem>>, vector<1x128xf32>
    %5 = vector.broadcast %4 : vector<1x128xf32> to vector<8x128xf32>
    %6 = arith.addf %3, %5 : vector<8x128xf32>
    %7 = arith.truncf %6 : vector<8x128xf32> to vector<8x128xbf16>
    %8 = math.tanh %7 : vector<8x128xbf16>
    %c0_5 = arith.constant 0 : index
    %c0_6 = arith.constant 0 : index
    %9 = vector.load %arg4[%c0_5, %c0_6] : memref<128x128xbf16, #tpu.memory_space<vmem>>, vector<128x128xbf16>
    %cst_7 = arith.constant dense<0.000000e+00> : vector<8x128xf32>
    %10 = tpu.matmul %8, %9, %cst_7 {dimension_numbers = #tpu.dot_dimension_numbers<[1], [0], [0], [1], [0, 0, 1, 1], [], []>} : vector<8x128xbf16>, vector<128x128xbf16>, vector<8x128xf32> -> vector<8x128xf32>
    %c0_8 = arith.constant 0 : index
    %c0_9 = arith.constant 0 : index
    %11 = vector.load %arg5[%c0_8, %c0_9] : memref<1x128xf32, #tpu.memory_space<vmem>>, vector<1x128xf32>
    %12 = vector.broadcast %11 : vector<1x128xf32> to vector<8x128xf32>
    %13 = arith.addf %10, %12 : vector<8x128xf32>
    %14 = arith.truncf %13 : vector<8x128xf32> to vector<8x128xbf16>
    %15 = math.tanh %14 : vector<8x128xbf16>
    %c0_10 = arith.constant 0 : index
    %c0_11 = arith.constant 0 : index
    %16 = vector.load %arg6[%c0_10, %c0_11] : memref<128x128xbf16, #tpu.memory_space<vmem>>, vector<128x128xbf16>
    %cst_12 = arith.constant dense<0.000000e+00> : vector<8x128xf32>
    %17 = tpu.matmul %15, %16, %cst_12 {dimension_numbers = #tpu.dot_dimension_numbers<[1], [0], [0], [1], [0, 0, 1, 1], [], []>} : vector<8x128xbf16>, vector<128x128xbf16>, vector<8x128xf32> -> vector<8x128xf32>
    %c0_13 = arith.constant 0 : index
    %c0_14 = arith.constant 0 : index
    %18 = vector.load %arg7[%c0_13, %c0_14] : memref<1x128xf32, #tpu.memory_space<vmem>>, vector<1x128xf32>
    %19 = vector.broadcast %18 : vector<1x128xf32> to vector<8x128xf32>
    %20 = arith.addf %17, %19 : vector<8x128xf32>
    %c0_15 = arith.constant 0 : index
    %c0_16 = arith.constant 0 : index
    %21 = vector.load %arg8[%c0_15, %c0_16] : memref<8x128xf32, #tpu.memory_space<vmem>>, vector<8x128xf32>
    tpu.vector_store %arg8[%c0_15, %c0_16], %20 {strides = array<i32>} : memref<8x128xf32, #tpu.memory_space<vmem>>, vector<8x128xf32>,
    return
  }
  func.func @transform_0(%arg0: i32) -> (i32, i32) {
    %c0_i32 = arith.constant 0 : i32
    %c0_i32_0 = arith.constant 0 : i32
    return %arg0, %c0_i32 : i32, i32
  }
  func.func @transform_1(%arg0: i32) -> (i32, i32) {
    %c0_i32 = arith.constant 0 : i32
    %c0_i32_0 = arith.constant 0 : i32
    %c0_i32_1 = arith.constant 0 : i32
    return %c0_i32, %c0_i32_0 : i32, i32
  }
  func.func @transform_2(%arg0: i32) -> (i32, i32) {
    %c0_i32 = arith.constant 0 : i32
    %c0_i32_0 = arith.constant 0 : i32
    %c0_i32_1 = arith.constant 0 : i32
    return %c0_i32, %c0_i32_0 : i32, i32
  }
  func.func @transform_3(%arg0: i32) -> (i32, i32) {
    %c0_i32 = arith.constant 0 : i32
    %c0_i32_0 = arith.constant 0 : i32
    %c0_i32_1 = arith.constant 0 : i32
    return %c0_i32, %c0_i32_0 : i32, i32
  }
  func.func @transform_4(%arg0: i32) -> (i32, i32) {
    %c0_i32 = arith.constant 0 : i32
    %c0_i32_0 = arith.constant 0 : i32
    %c0_i32_1 = arith.constant 0 : i32
    return %c0_i32, %c0_i32_0 : i32, i32
  }
  func.func @transform_5(%arg0: i32) -> (i32, i32) {
    %c0_i32 = arith.constant 0 : i32
    %c0_i32_0 = arith.constant 0 : i32
    %c0_i32_1 = arith.constant 0 : i32
    return %c0_i32, %c0_i32_0 : i32, i32
  }
  func.func @transform_6(%arg0: i32) -> (i32, i32) {
    %c0_i32 = arith.constant 0 : i32
    %c0_i32_0 = arith.constant 0 : i32
    %c0_i32_1 = arith.constant 0 : i32
    return %c0_i32, %c0_i32_0 : i32, i32
  }
  func.func @transform_7(%arg0: i32) -> (i32, i32) {
    %c0_i32 = arith.constant 0 : i32
    %c0_i32_0 = arith.constant 0 : i32
    return %arg0, %c0_i32 : i32, i32
  }
}

</mosaic_0001>

<llo_original>
// kernel: _forward_impl.1
$region0: #{_forward_impl.1}
  #allocation0 [shape = 'u32[]', space=smem, size = 0x4, offset = 0x4, fixed_abs, tag = 'smem constant byte address 0x4 - core index']
  #allocation1 [shape = 'u32[144,128]{1,0:T(1,128)}', space=vmem, size = 0x12000, scoped, tag = 'internal scratch']
  %s0 = inlined_call_operand.hbm [shape: f32[8,16], index: 0, kind: input, shape index: {}]
  %s1 = inlined_call_operand.hbm [shape: bf16[16,128], index: 1, kind: input, shape index: {}]
  %s2 = inlined_call_operand.vmem [shape: f32[1,128], index: 2, kind: input, shape index: {}]
  %s3 = inlined_call_operand.hbm [shape: bf16[128,128], index: 3, kind: input, shape index: {}]
  %s4 = inlined_call_operand.vmem [shape: f32[1,128], index: 4, kind: input, shape index: {}]
  %s5 = inlined_call_operand.hbm [shape: bf16[128,128], index: 5, kind: input, shape index: {}]
  %s6 = inlined_call_operand.vmem [shape: f32[1,128], index: 6, kind: input, shape index: {}]
  %s7 = inlined_call_operand.hbm [shape: f32[8,128], index: 7, kind: output, shape index: {}]
  %s8 = sld [smem:[#allocation0]]
  $region54: #{_forward_impl.1} parent=0
    _
  %s10 = ssub.s32 1, %s8
  %s11 = scalar_select 0, %s10, %s8
  $region1: #{_forward_impl.1} parent=0
    #allocation2 [shape = 'u8[4096]{0}', space=vmem, size = 0x1000, scoped, tag = 'input window, operand 0, single buffered']
    #allocation3 [shape = 's32[1]{0}', space=sflag, size = 0x4, scoped, tag = 'scoped memory for _forward_impl.1']
    #allocation4 [shape = 's32[1]{0}', space=sflag, size = 0x4, scoped, tag = 'scoped memory for _forward_impl.1']
    #allocation5 [shape = 'u8[4096]{0}', space=vmem, size = 0x1000, scoped, tag = 'input window, operand 1, single buffered']
    #allocation6 [shape = 's32[1]{0}', space=sflag, size = 0x4, scoped, tag = 'scoped memory for _forward_impl.1']
    #allocation7 [shape = 'u8[32768]{0}', space=vmem, size = 0x8000, scoped, tag = 'input window, operand 3, single buffered']
    #allocation8 [shape = 'u8[32768]{0}', space=vmem, size = 0x8000, scoped, tag = 'input window, operand 5, single buffered']
    #allocation9 [shape = 's32[1]{0}', space=sflag, size = 0x4, scoped, tag = 'scoped memory for _forward_impl.1']
    #allocation10 [shape = 'u8[4096]{0}', space=vmem, size = 0x1000, scoped, tag = 'output window, operand 0, single buffered']
    %12 = vsyncpa [#allocation3], 0
    %13 = vsyncpa [#allocation6], 0
    %14 = vsyncpa [#allocation9], 0
    %15 = vsyncpa [#allocation4], 0
    // Predicated region
    $region2: #{_forward_impl.1} parent=1 // pred_check
      _
    $region3: #{_forward_impl.1} parent=1 // pred_check_branch
      %17 = sbr.rel (0) target = $region5
    $region4: #{_forward_impl.1} parent=1 // pred_region
      %s19 = ssub.s32 128, 128
      %20 = vsyncadd [#allocation3], %s19
      %s22 = sshll.u32 [#allocation2], 4
      %s23 = int_to_ptr.vmem [resolvable:$true] %s22
      %25 = dma.hbm_to_vmem [thread:$0]  %s0, 128, %s23, [#allocation3]
    $region5: #{_forward_impl.1} parent=1 // pred_fallthru
      _
    // Predicated region
    $region6: #{_forward_impl.1} parent=1 // pred_check
      _
    $region7: #{_forward_impl.1} parent=1 // pred_check_branch
      %27 = sbr.rel (0) target = $region9
    $region8: #{_forward_impl.1} parent=1 // pred_region
      %s29 = ssub.s32 128, 128
      %30 = vsyncadd [#allocation6], %s29
      %s31 = sshll.u32 [#allocation5], 4
      %s32 = int_to_ptr.vmem [resolvable:$true] %s31
      %37 = dma.hbm_to_vmem [thread:$0]  %s1, 128, %s32, [#allocation6], 64, 64, 4
    $region9: #{_forward_impl.1} parent=1 // pred_fallthru
      _
    // Predicated region
    $region10: #{_forward_impl.1} parent=1 // pred_check
      _
    $region11: #{_forward_impl.1} parent=1 // pred_check_branch
      %39 = sbr.rel (0) target = $region13
    $region12: #{_forward_impl.1} parent=1 // pred_region
      _
    $region13: #{_forward_impl.1} parent=1 // pred_fallthru
      _
    // Predicated region
    $region14: #{_forward_impl.1} parent=1 // pred_check
      _
    $region15: #{_forward_impl.1} parent=1 // pred_check_branch
      %41 = sbr.rel (0) target = $region17
    $region16: #{_forward_impl.1} parent=1 // pred_region
      %s43 = ssub.s32 1024, 1024
      %44 = vsyncadd [#allocation6], %s43
      %s45 = sshll.u32 [#allocation7], 4
      %s46 = int_to_ptr.vmem [resolvable:$true] %s45
      %51 = dma.hbm_to_vmem [thread:$0]  %s3, 1024, %s46, [#allocation6], 64, 64, 4
    $region17: #{_forward_impl.1} parent=1 // pred_fallthru
      _
    // Predicated region
    $region18: #{_forward_impl.1} parent=1 // pred_check
      _
    $region19: #{_forward_impl.1} parent=1 // pred_check_branch
      %53 = sbr.rel (0) target = $region21
    $region20: #{_forward_impl.1} parent=1 // pred_region
      _
    $region21: #{_forward_impl.1} parent=1 // pred_fallthru
      _
    // Predicated region
    $region22: #{_forward_impl.1} parent=1 // pred_check
      _
    $region23: #{_forward_impl.1} parent=1 // pred_check_branch
      %55 = sbr.rel (0) target = $region25
    $region24: #{_forward_impl.1} parent=1 // pred_region
      %s57 = ssub.s32 1024, 1024
      %58 = vsyncadd [#allocation9], %s57
      %s59 = sshll.u32 [#allocation8], 4
      %s60 = int_to_ptr.vmem [resolvable:$true] %s59
      %65 = dma.hbm_to_vmem [thread:$0]  %s5, 1024, %s60, [#allocation9], 64, 64, 4
    $region25: #{_forward_impl.1} parent=1 // pred_fallthru
      _
    // Predicated region
    $region26: #{_forward_impl.1} parent=1 // pred_check
      _
    $region27: #{_forward_impl.1} parent=1 // pred_check_branch
      %67 = sbr.rel (0) target = $region29
    $region28: #{_forward_impl.1} parent=1 // pred_region
      _
    $region29: #{_forward_impl.1} parent=1 // pred_fallthru
      _
    // Predicated region
    $region30: #{_forward_impl.1} parent=1 // pred_check
      _
    $region31: #{_forward_impl.1} parent=1 // pred_check_branch
      %69 = sbr.rel (0) target = $region33
    $region32: #{_forward_impl.1} parent=1 // pred_region
      %70 = dma.done [#allocation3], 128
    $region33: #{_forward_impl.1} parent=1 // pred_fallthru
      _
    // Predicated region
    $region34: #{_forward_impl.1} parent=1 // pred_check
      _
    $region35: #{_forward_impl.1} parent=1 // pred_check_branch
      %72 = sbr.rel (0) target = $region37
    $region36: #{_forward_impl.1} parent=1 // pred_region
      %73 = dma.done [#allocation6], 128
    $region37: #{_forward_impl.1} parent=1 // pred_fallthru
      _
    // Predicated region
    $region38: #{_forward_impl.1} parent=1 // pred_check
      _
    $region39: #{_forward_impl.1} parent=1 // pred_check_branch
      %75 = sbr.rel (0) target = $region41
    $region40: #{_forward_impl.1} parent=1 // pred_region
      %76 = dma.done [#allocation6], 1024
    $region41: #{_forward_impl.1} parent=1 // pred_fallthru
      _
    // Predicated region
    $region42: #{_forward_impl.1} parent=1 // pred_check
      _
    $region43: #{_forward_impl.1} parent=1 // pred_check_branch
      %78 = sbr.rel (0) target = $region45
    $region44: #{_forward_impl.1} parent=1 // pred_region
      %79 = dma.done [#allocation9], 1024
    $region45: #{_forward_impl.1} parent=1 // pred_fallthru
      _
    %v81 = vld [vmem:[#allocation2] sm:$0xff]
    %v82 = vpack.c.bf16 %v81, %v81
    %v83 = vld [vmem:[#allocation5] sm:$0xf]
    %v84 = vld [vmem:[#allocation5 + $0x4] sm:$0xf]
    %v85 = vld [vmem:[%s2] sm:$0x1]
    %v87 = vlaneseq
    %v88 = vshrl.u32 %v87, 7
    %v89 = vsub.s32 0, %v88
    %v90 = vrot.slane %v85, %v89
    %v94 = vunpack.c.l.b16 %v83
    %v95 = vunpack.c.l.b16 %v84
    %v96 = vpack.c.b16 %v95, %v94
    %vm98 = vcmask 130048
    %v100 = vsel %vm98, %v82, 0
    %102 = vmatprep.subr.bf16.mxu0 0
    %103 = vmatpush1.bf16.msra.mxu0 %v96
    %104 = vmatprep.subr.bf16.mxu0 0
    %105 = vmatpush1.bf16.msra.mxu0 0
    %106 = vmatprep.subr.bf16.mxu0 0
    %107 = vmatpush1.bf16.msra.mxu0 0
    %108 = vmatprep.subr.bf16.mxu0 0
    %109 = vmatpush1.bf16.msra.mxu0 0
    %110 = vmatprep.subr.bf16.mxu0 0
    %111 = vmatpush1.bf16.msra.mxu0 0
    %112 = vmatprep.subr.bf16.mxu0 0
    %113 = vmatpush1.bf16.msra.mxu0 0
    %114 = vmatprep.subr.bf16.mxu0 0
    %115 = vmatpush1.bf16.msra.mxu0 0
    %116 = vmatprep.subr.bf16.mxu0 0
    %117 = vmatpush1.bf16.msra.mxu0 0
    %118 = vmatprep.subr.bf16.mxu0 0
    %119 = vmatpush1.bf16.msra.mxu0 0
    %120 = vmatprep.subr.bf16.mxu0 0
    %121 = vmatpush1.bf16.msra.mxu0 0
    %122 = vmatprep.subr.bf16.mxu0 0
    %123 = vmatpush1.bf16.msra.mxu0 0
    %124 = vmatprep.subr.bf16.mxu0 0
    %125 = vmatpush1.bf16.msra.mxu0 0
    %126 = vmatprep.subr.bf16.mxu0 0
    %127 = vmatpush1.bf16.msra.mxu0 0
    %128 = vmatprep.subr.bf16.mxu0 0
    %129 = vmatpush1.bf16.msra.mxu0 0
    %130 = vmatprep.subr.bf16.mxu0 0
    %131 = vmatpush1.bf16.msra.mxu0 0
    %132 = vmatprep.subr.bf16.mxu0 0
    %133 = vmatpush1.bf16.msra.mxu0 0
    %134 = vmatprep.mubr.bf16.mxu0 0
    %135 = vmatmul.mubr.bf16.gmra.mrb[0].mxu0 %v100
    %v136 = vpop.f32.mrb[0].mxu0
    %v137 = vadd.f32 %v90, %v136
    %v138 = vpop.f32.mrb[0].mxu0
    %v139 = vpop.f32.mrb[0].mxu0
    %v140 = vpop.f32.mrb[0].mxu0
    %141 = vdwg.mxu0
    %v142 = vpack.c.bf16 %v137, %v137
    %v143 = vtanh.bf16.pop %v142
    %v144 = vld [vmem:[#allocation7] sm:$0xf]
    %v145 = vld [vmem:[#allocation7 + $0x4] sm:$0xf]
    %v146 = vld [vmem:[#allocation7 + $0x8] sm:$0xf]
    %v147 = vld [vmem:[#allocation7 + $0xc] sm:$0xf]
    %v148 = vld [vmem:[#allocation7 + $0x10] sm:$0xf]
    %v149 = vld [vmem:[#allocation7 + $0x14] sm:$0xf]
    %v150 = vld [vmem:[#allocation7 + $0x18] sm:$0xf]
    %v151 = vld [vmem:[#allocation7 + $0x1c] sm:$0xf]
    %v152 = vld [vmem:[#allocation7 + $0x20] sm:$0xf]
    %v153 = vld [vmem:[#allocation7 + $0x24] sm:$0xf]
    %v154 = vld [vmem:[#allocation7 + $0x28] sm:$0xf]
    %v155 = vld [vmem:[#allocation7 + $0x2c] sm:$0xf]
    %v156 = vld [vmem:[#allocation7 + $0x30] sm:$0xf]
    %v157 = vld [vmem:[#allocation7 + $0x34] sm:$0xf]
    %v158 = vld [vmem:[#allocation7 + $0x38] sm:$0xf]
    %v159 = vld [vmem:[#allocation7 + $0x3c] sm:$0xf]
    %v160 = vld [vmem:[%s4] sm:$0x1]
    %v162 = vlaneseq
    %v163 = vshrl.u32 %v162, 7
    %v164 = vsub.s32 0, %v163
    %v165 = vrot.slane %v160, %v164
    %v183 = vunpack.c.l.b16 %v144
    %v184 = vunpack.c.l.b16 %v145
    %v185 = vunpack.c.l.b16 %v146
    %v186 = vunpack.c.l.b16 %v147
    %v187 = vunpack.c.l.b16 %v148
    %v188 = vunpack.c.l.b16 %v149
    %v189 = vunpack.c.l.b16 %v150
    %v190 = vunpack.c.l.b16 %v151
    %v191 = vunpack.c.l.b16 %v152
    %v192 = vunpack.c.l.b16 %v153
    %v193 = vunpack.c.l.b16 %v154
    %v194 = vunpack.c.l.b16 %v155
    %v195 = vunpack.c.l.b16 %v156
    %v196 = vunpack.c.l.b16 %v157
    %v197 = vunpack.c.l.b16 %v158
    %v198 = vunpack.c.l.b16 %v159
    %v199 = vpack.c.b16 %v184, %v183
    %v200 = vpack.c.b16 %v186, %v185
    %v201 = vpack.c.b16 %v188, %v187
    %v202 = vpack.c.b16 %v190, %v189
    %v203 = vpack.c.b16 %v192, %v191
    %v204 = vpack.c.b16 %v194, %v193
    %v205 = vpack.c.b16 %v196, %v195
    %v206 = vpack.c.b16 %v198, %v197
    %215 = vmatprep.subr.bf16.mxu0 0
    %216 = vmatpush1.bf16.msra.mxu0 %v199
    %217 = vmatprep.subr.bf16.mxu0 0
    %218 = vmatpush1.bf16.msra.mxu0 %v200
    %219 = vmatprep.subr.bf16.mxu0 0
    %220 = vmatpush1.bf16.msra.mxu0 %v201
    %221 = vmatprep.subr.bf16.mxu0 0
    %222 = vmatpush1.bf16.msra.mxu0 %v202
    %223 = vmatprep.subr.bf16.mxu0 0
    %224 = vmatpush1.bf16.msra.mxu0 %v203
    %225 = vmatprep.subr.bf16.mxu0 0
    %226 = vmatpush1.bf16.msra.mxu0 %v204
    %227 = vmatprep.subr.bf16.mxu0 0
    %228 = vmatpush1.bf16.msra.mxu0 %v205
    %229 = vmatprep.subr.bf16.mxu0 0
    %230 = vmatpush1.bf16.msra.mxu0 %v206
    %231 = vmatprep.subr.bf16.mxu0 0
    %232 = vmatpush1.bf16.msra.mxu0 0
    %233 = vmatprep.subr.bf16.mxu0 0
    %234 = vmatpush1.bf16.msra.mxu0 0
    %235 = vmatprep.subr.bf16.mxu0 0
    %236 = vmatpush1.bf16.msra.mxu0 0
    %237 = vmatprep.subr.bf16.mxu0 0
    %238 = vmatpush1.bf16.msra.mxu0 0
    %239 = vmatprep.subr.bf16.mxu0 0
    %240 = vmatpush1.bf16.msra.mxu0 0
    %241 = vmatprep.subr.bf16.mxu0 0
    %242 = vmatpush1.bf16.msra.mxu0 0
    %243 = vmatprep.subr.bf16.mxu0 0
    %244 = vmatpush1.bf16.msra.mxu0 0
    %245 = vmatprep.subr.bf16.mxu0 0
    %246 = vmatpush1.bf16.msra.mxu0 0
    %247 = vmatprep.mubr.bf16.mxu0 0
    %248 = vmatmul.mubr.bf16.gmra.mrb[0].mxu0 %v143
    %v249 = vpop.f32.mrb[0].mxu0
    %v250 = vadd.f32 %v165, %v249
    %v251 = vpop.f32.mrb[0].mxu0
    %v252 = vpop.f32.mrb[0].mxu0
    %v253 = vpop.f32.mrb[0].mxu0
    %254 = vdwg.mxu0
    %v255 = vpack.c.bf16 %v250, %v250
    %v256 = vtanh.bf16.pop %v255
    %v257 = vld [vmem:[#allocation8] sm:$0xf]
    %v258 = vld [vmem:[#allocation8 + $0x4] sm:$0xf]
    %v259 = vld [vmem:[#allocation8 + $0x8] sm:$0xf]
    %v260 = vld [vmem:[#allocation8 + $0xc] sm:$0xf]
    %v261 = vld [vmem:[#allocation8 + $0x10] sm:$0xf]
    %v262 = vld [vmem:[#allocation8 + $0x14] sm:$0xf]
    %v263 = vld [vmem:[#allocation8 + $0x18] sm:$0xf]
    %v264 = vld [vmem:[#allocation8 + $0x1c] sm:$0xf]
    %v265 = vld [vmem:[#allocation8 + $0x20] sm:$0xf]
    %v266 = vld [vmem:[#allocation8 + $0x24] sm:$0xf]
    %v267 = vld [vmem:[#allocation8 + $0x28] sm:$0xf]
    %v268 = vld [vmem:[#allocation8 + $0x2c] sm:$0xf]
    %v269 = vld [vmem:[#allocation8 + $0x30] sm:$0xf]
    %v270 = vld [vmem:[#allocation8 + $0x34] sm:$0xf]
    %v271 = vld [vmem:[#allocation8 + $0x38] sm:$0xf]
    %v272 = vld [vmem:[#allocation8 + $0x3c] sm:$0xf]
    %v273 = vld [vmem:[%s6] sm:$0x1]
    %v275 = vlaneseq
    %v276 = vshrl.u32 %v275, 7
    %v277 = vsub.s32 0, %v276
    %v278 = vrot.slane %v273, %v277
    %v296 = vunpack.c.l.b16 %v257
    %v297 = vunpack.c.l.b16 %v258
    %v298 = vunpack.c.l.b16 %v259
    %v299 = vunpack.c.l.b16 %v260
    %v300 = vunpack.c.l.b16 %v261
    %v301 = vunpack.c.l.b16 %v262
    %v302 = vunpack.c.l.b16 %v263
    %v303 = vunpack.c.l.b16 %v264
    %v304 = vunpack.c.l.b16 %v265
    %v305 = vunpack.c.l.b16 %v266
    %v306 = vunpack.c.l.b16 %v267
    %v307 = vunpack.c.l.b16 %v268
    %v308 = vunpack.c.l.b16 %v269
    %v309 = vunpack.c.l.b16 %v270
    %v310 = vunpack.c.l.b16 %v271
    %v311 = vunpack.c.l.b16 %v272
    %v312 = vpack.c.b16 %v297, %v296
    %v313 = vpack.c.b16 %v299, %v298
    %v314 = vpack.c.b16 %v301, %v300
    %v315 = vpack.c.b16 %v303, %v302
    %v316 = vpack.c.b16 %v305, %v304
    %v317 = vpack.c.b16 %v307, %v306
    %v318 = vpack.c.b16 %v309, %v308
    %v319 = vpack.c.b16 %v311, %v310
    %328 = vmatprep.subr.bf16.mxu0 0
    %329 = vmatpush1.bf16.msra.mxu0 %v312
    %330 = vmatprep.subr.bf16.mxu0 0
    %331 = vmatpush1.bf16.msra.mxu0 %v313
    %332 = vmatprep.subr.bf16.mxu0 0
    %333 = vmatpush1.bf16.msra.mxu0 %v314
    %334 = vmatprep.subr.bf16.mxu0 0
    %335 = vmatpush1.bf16.msra.mxu0 %v315
    %336 = vmatprep.subr.bf16.mxu0 0
    %337 = vmatpush1.bf16.msra.mxu0 %v316
    %338 = vmatprep.subr.bf16.mxu0 0
    %339 = vmatpush1.bf16.msra.mxu0 %v317
    %340 = vmatprep.subr.bf16.mxu0 0
    %341 = vmatpush1.bf16.msra.mxu0 %v318
    %342 = vmatprep.subr.bf16.mxu0 0
    %343 = vmatpush1.bf16.msra.mxu0 %v319
    %344 = vmatprep.subr.bf16.mxu0 0
    %345 = vmatpush1.bf16.msra.mxu0 0
    %346 = vmatprep.subr.bf16.mxu0 0
    %347 = vmatpush1.bf16.msra.mxu0 0
    %348 = vmatprep.subr.bf16.mxu0 0
    %349 = vmatpush1.bf16.msra.mxu0 0
    %350 = vmatprep.subr.bf16.mxu0 0
    %351 = vmatpush1.bf16.msra.mxu0 0
    %352 = vmatprep.subr.bf16.mxu0 0
    %353 = vmatpush1.bf16.msra.mxu0 0
    %354 = vmatprep.subr.bf16.mxu0 0
    %355 = vmatpush1.bf16.msra.mxu0 0
    %356 = vmatprep.subr.bf16.mxu0 0
    %357 = vmatpush1.bf16.msra.mxu0 0
    %358 = vmatprep.subr.bf16.mxu0 0
    %359 = vmatpush1.bf16.msra.mxu0 0
    %360 = vmatprep.mubr.bf16.mxu0 0
    %361 = vmatmul.mubr.bf16.gmra.mrb[0].mxu0 %v256
    %v362 = vpop.f32.mrb[0].mxu0
    %v363 = vadd.f32 %v278, %v362
    %v364 = vpop.f32.mrb[0].mxu0
    %v365 = vpop.f32.mrb[0].mxu0
    %v366 = vpop.f32.mrb[0].mxu0
    %367 = vdwg.mxu0
    %368 = vst [vmem:[#allocation10] sm:$0xff] %v363
    // Predicated region
    $region46: #{_forward_impl.1} parent=1 // pred_check
      _
    $region47: #{_forward_impl.1} parent=1 // pred_check_branch
      %370 = sbr.rel (0) target = $region49
    $region48: #{_forward_impl.1} parent=1 // pred_region
      %s372 = ssub.s32 128, 128
      %373 = vsyncadd [#allocation4], %s372
      %s375 = sshll.u32 [#allocation10], 4
      %s376 = int_to_ptr.vmem [resolvable:$true] %s375
      %378 = dma.vmem_to_hbm [thread:$0]  %s376, 128, %s7, [#allocation4]
    $region49: #{_forward_impl.1} parent=1 // pred_fallthru
      _
    // Predicated region
    $region50: #{_forward_impl.1} parent=1 // pred_check
      _
    $region51: #{_forward_impl.1} parent=1 // pred_check_branch
      %380 = sbr.rel (0) target = $region53
    $region52: #{_forward_impl.1} parent=1 // pred_region
      %381 = dma.done [#allocation4], 128
    $region53: #{_forward_impl.1} parent=1 // pred_fallthru
      _
    %382 = vsyncpa [#allocation3], 1
    %383 = vsyncpa [#allocation6], 1
    %384 = vsyncpa [#allocation9], 1
    %385 = vsyncpa [#allocation4], 1

// kernel: _forward_impl.1
$region0: #{_forward_impl.1}
  #allocation0 [shape = 'u32[]', space=smem, size = 0x4, offset = 0x4, fixed_abs, tag = 'smem constant byte address 0x4 - core index']
  #allocation1 [shape = 'u32[144,128]{1,0:T(1,128)}', space=vmem, size = 0x12000, scoped, tag = 'internal scratch']
  %s0 = inlined_call_operand.hbm [shape: f32[8,16], index: 0, kind: input, shape index: {}]
  %s1 = inlined_call_operand.hbm [shape: bf16[16,128], index: 1, kind: input, shape index: {}]
  %s2 = inlined_call_operand.vmem [shape: f32[1,128], index: 2, kind: input, shape index: {}]
  %s3 = inlined_call_operand.hbm [shape: bf16[128,128], index: 3, kind: input, shape index: {}]
  %s4 = inlined_call_operand.vmem [shape: f32[1,128], index: 4, kind: input, shape index: {}]
  %s5 = inlined_call_operand.hbm [shape: bf16[128,128], index: 5, kind: input, shape index: {}]
  %s6 = inlined_call_operand.vmem [shape: f32[1,128], index: 6, kind: input, shape index: {}]
  %s7 = inlined_call_operand.hbm [shape: f32[8,128], index: 7, kind: output, shape index: {}]
  %s8 = sld [smem:[#allocation0]]
  $region54: #{_forward_impl.1} parent=0
    _
  %s10 = ssub.s32 1, %s8
  %s11 = scalar_select 0, %s10, %s8
  $region1: #{_forward_impl.1} parent=0
    #allocation2 [shape = 'u8[4096]{0}', space=vmem, size = 0x1000, scoped, tag = 'input window, operand 0, single buffered']
    #allocation3 [shape = 's32[1]{0}', space=sflag, size = 0x4, scoped, tag = 'scoped memory for _forward_impl.1']
    #allocation4 [shape = 's32[1]{0}', space=sflag, size = 0x4, scoped, tag = 'scoped memory for _forward_impl.1']
    #allocation5 [shape = 'u8[4096]{0}', space=vmem, size = 0x1000, scoped, tag = 'input window, operand 1, single buffered']
    #allocation6 [shape = 's32[1]{0}', space=sflag, size = 0x4, scoped, tag = 'scoped memory for _forward_impl.1']
    #allocation7 [shape = 'u8[32768]{0}', space=vmem, size = 0x8000, scoped, tag = 'input window, operand 3, single buffered']
    #allocation8 [shape = 'u8[32768]{0}', space=vmem, size = 0x8000, scoped, tag = 'input window, operand 5, single buffered']
    #allocation9 [shape = 's32[1]{0}', space=sflag, size = 0x4, scoped, tag = 'scoped memory for _forward_impl.1']
    #allocation10 [shape = 'u8[4096]{0}', space=vmem, size = 0x1000, scoped, tag = 'output window, operand 0, single buffered']
    %12 = vsyncpa [#allocation3], 0
    %13 = vsyncpa [#allocation6], 0
    %14 = vsyncpa [#allocation9], 0
    %15 = vsyncpa [#allocation4], 0
    // Predicated region
    $region2: #{_forward_impl.1} parent=1 // pred_check
      _
    $region3: #{_forward_impl.1} parent=1 // pred_check_branch
      %17 = sbr.rel (0) target = $region5
    $region4: #{_forward_impl.1} parent=1 // pred_region
      %s19 = ssub.s32 128, 128
      %20 = vsyncadd [#allocation3], %s19
      %s22 = sshll.u32 [#allocation2], 4
      %s23 = int_to_ptr.vmem [resolvable:$true] %s22
      %25 = dma.hbm_to_vmem [thread:$0]  %s0, 128, %s23, [#allocation3]
    $region5: #{_forward_impl.1} parent=1 // pred_fallthru
      _
    // Predicated region
    $region6: #{_forward_impl.1} parent=1 // pred_check
      _
    $region7: #{_forward_impl.1} parent=1 // pred_check_branch
      %27 = sbr.rel (0) target = $region9
    $region8: #{_forward_impl.1} parent=1 // pred_region
      %s29 = ssub.s32 128, 128
      %30 = vsyncadd [#allocation6], %s29
      %s31 = sshll.u32 [#allocation5], 4
      %s32 = int_to_ptr.vmem [resolvable:$true] %s31
      %37 = dma.hbm_to_vmem [thread:$0]  %s1, 128, %s32, [#allocation6], 64, 64, 4
    $region9: #{_forward_impl.1} parent=1 // pred_fallthru
      _
    // Predicated region
    $region10: #{_forward_impl.1} parent=1 // pred_check
      _
    $region11: #{_forward_impl.1} parent=1 // pred_check_branch
      %39 = sbr.rel (0) target = $region13
    $region12: #{_forward_impl.1} parent=1 // pred_region
      _
    $region13: #{_forward_impl.1} parent=1 // pred_fallthru
      _
    // Predicated region
    $region14: #{_forward_impl.1} parent=1 // pred_check
      _
    $region15: #{_forward_impl.1} parent=1 // pred_check_branch
      %41 = sbr.rel (0) target = $region17
    $region16: #{_forward_impl.1} parent=1 // pred_region
      %s43 = ssub.s32 1024, 1024
      %44 = vsyncadd [#allocation6], %s43
      %s45 = sshll.u32 [#allocation7], 4
      %s46 = int_to_ptr.vmem [resolvable:$true] %s45
      %51 = dma.hbm_to_vmem [thread:$0]  %s3, 1024, %s46, [#allocation6], 64, 64, 4
    $region17: #{_forward_impl.1} parent=1 // pred_fallthru
      _
    // Predicated region
    $region18: #{_forward_impl.1} parent=1 // pred_check
      _
    $region19: #{_forward_impl.1} parent=1 // pred_check_branch
      %53 = sbr.rel (0) target = $region21
    $region20: #{_forward_impl.1} parent=1 // pred_region
      _
    $region21: #{_forward_impl.1} parent=1 // pred_fallthru
      _
    // Predicated region
    $region22: #{_forward_impl.1} parent=1 // pred_check
      _
    $region23: #{_forward_impl.1} parent=1 // pred_check_branch
      %55 = sbr.rel (0) target = $region25
    $region24: #{_forward_impl.1} parent=1 // pred_region
      %s57 = ssub.s32 1024, 1024
      %58 = vsyncadd [#allocation9], %s57
      %s59 = sshll.u32 [#allocation8], 4
      %s60 = int_to_ptr.vmem [resolvable:$true] %s59
      %65 = dma.hbm_to_vmem [thread:$0]  %s5, 1024, %s60, [#allocation9], 64, 64, 4
    $region25: #{_forward_impl.1} parent=1 // pred_fallthru
      _
    // Predicated region
    $region26: #{_forward_impl.1} parent=1 // pred_check
      _
    $region27: #{_forward_impl.1} parent=1 // pred_check_branch
      %67 = sbr.rel (0) target = $region29
    $region28: #{_forward_impl.1} parent=1 // pred_region
      _
    $region29: #{_forward_impl.1} parent=1 // pred_fallthru
      _
    // Predicated region
    $region30: #{_forward_impl.1} parent=1 // pred_check
      _
    $region31: #{_forward_impl.1} parent=1 // pred_check_branch
      %69 = sbr.rel (0) target = $region33
    $region32: #{_forward_impl.1} parent=1 // pred_region
      %70 = dma.done [#allocation3], 128
    $region33: #{_forward_impl.1} parent=1 // pred_fallthru
      _
    // Predicated region
    $region34: #{_forward_impl.1} parent=1 // pred_check
      _
    $region35: #{_forward_impl.1} parent=1 // pred_check_branch
      %72 = sbr.rel (0) target = $region37
    $region36: #{_forward_impl.1} parent=1 // pred_region
      %73 = dma.done [#allocation6], 128
    $region37: #{_forward_impl.1} parent=1 // pred_fallthru
      _
    // Predicated region
    $region38: #{_forward_impl.1} parent=1 // pred_check
      _
    $region39: #{_forward_impl.1} parent=1 // pred_check_branch
      %75 = sbr.rel (0) target = $region41
    $region40: #{_forward_impl.1} parent=1 // pred_region
      %76 = dma.done [#allocation6], 1024
    $region41: #{_forward_impl.1} parent=1 // pred_fallthru
      _
    // Predicated region
    $region42: #{_forward_impl.1} parent=1 // pred_check
      _
    $region43: #{_forward_impl.1} parent=1 // pred_check_branch
      %78 = sbr.rel (0) target = $region45
    $region44: #{_forward_impl.1} parent=1 // pred_region
      %79 = dma.done [#allocation9], 1024
    $region45: #{_forward_impl.1} parent=1 // pred_fallthru
      _
    %v81 = vld [vmem:[#allocation2] sm:$0xff]
    %v82 = vpack.c.bf16 %v81, %v81
    %v83 = vld [vmem:[#allocation5] sm:$0xf]
    %v84 = vld [vmem:[#allocation5 + $0x4] sm:$0xf]
    %v85 = vld [vmem:[%s2] sm:$0x1]
    %v87 = vlaneseq
    %v88 = vshrl.u32 %v87, 7
    %v89 = vsub.s32 0, %v88
    %v90 = vrot.slane %v85, %v89
    %v94 = vunpack.c.l.b16 %v83
    %v95 = vunpack.c.l.b16 %v84
    %v96 = vpack.c.b16 %v95, %v94
    %vm98 = vcmask 130048
    %v100 = vsel %vm98, %v82, 0
    %102 = vmatprep.subr.bf16.mxu0 0
    %103 = vmatpush1.bf16.msra.mxu0 %v96
    %104 = vmatprep.subr.bf16.mxu0 0
    %105 = vmatpush1.bf16.msra.mxu0 0
    %106 = vmatprep.subr.bf16.mxu0 0
    %107 = vmatpush1.bf16.msra.mxu0 0
    %108 = vmatprep.subr.bf16.mxu0 0
    %109 = vmatpush1.bf16.msra.mxu0 0
    %110 = vmatprep.subr.bf16.mxu0 0
    %111 = vmatpush1.bf16.msra.mxu0 0
    %112 = vmatprep.subr.bf16.mxu0 0
    %113 = vmatpush1.bf16.msra.mxu0 0
    %114 = vmatprep.subr.bf16.mxu0 0
    %115 = vmatpush1.bf16.msra.mxu0 0
    %116 = vmatprep.subr.bf16.mxu0 0
    %117 = vmatpush1.bf16.msra.mxu0 0
    %118 = vmatprep.subr.bf16.mxu0 0
    %119 = vmatpush1.bf16.msra.mxu0 0
    %120 = vmatprep.subr.bf16.mxu0 0
    %121 = vmatpush1.bf16.msra.mxu0 0
    %122 = vmatprep.subr.bf16.mxu0 0
    %123 = vmatpush1.bf16.msra.mxu0 0
    %124 = vmatprep.subr.bf16.mxu0 0
    %125 = vmatpush1.bf16.msra.mxu0 0
    %126 = vmatprep.subr.bf16.mxu0 0
    %127 = vmatpush1.bf16.msra.mxu0 0
    %128 = vmatprep.subr.bf16.mxu0 0
    %129 = vmatpush1.bf16.msra.mxu0 0
    %130 = vmatprep.subr.bf16.mxu0 0
    %131 = vmatpush1.bf16.msra.mxu0 0
    %132 = vmatprep.subr.bf16.mxu0 0
    %133 = vmatpush1.bf16.msra.mxu0 0
    %134 = vmatprep.mubr.bf16.mxu0 0
    %135 = vmatmul.mubr.bf16.gmra.mrb[0].mxu0 %v100
    %v136 = vpop.f32.mrb[0].mxu0
    %v137 = vadd.f32 %v90, %v136
    %v138 = vpop.f32.mrb[0].mxu0
    %v139 = vpop.f32.mrb[0].mxu0
    %v140 = vpop.f32.mrb[0].mxu0
    %141 = vdwg.mxu0
    %v142 = vpack.c.bf16 %v137, %v137
    %v143 = vtanh.bf16.pop %v142
    %v144 = vld [vmem:[#allocation7] sm:$0xf]
    %v145 = vld [vmem:[#allocation7 + $0x4] sm:$0xf]
    %v146 = vld [vmem:[#allocation7 + $0x8] sm:$0xf]
    %v147 = vld [vmem:[#allocation7 + $0xc] sm:$0xf]
    %v148 = vld [vmem:[#allocation7 + $0x10] sm:$0xf]
    %v149 = vld [vmem:[#allocation7 + $0x14] sm:$0xf]
    %v150 = vld [vmem:[#allocation7 + $0x18] sm:$0xf]
    %v151 = vld [vmem:[#allocation7 + $0x1c] sm:$0xf]
    %v152 = vld [vmem:[#allocation7 + $0x20] sm:$0xf]
    %v153 = vld [vmem:[#allocation7 + $0x24] sm:$0xf]
    %v154 = vld [vmem:[#allocation7 + $0x28] sm:$0xf]
    %v155 = vld [vmem:[#allocation7 + $0x2c] sm:$0xf]
    %v156 = vld [vmem:[#allocation7 + $0x30] sm:$0xf]
    %v157 = vld [vmem:[#allocation7 + $0x34] sm:$0xf]
    %v158 = vld [vmem:[#allocation7 + $0x38] sm:$0xf]
    %v159 = vld [vmem:[#allocation7 + $0x3c] sm:$0xf]
    %v160 = vld [vmem:[%s4] sm:$0x1]
    %v162 = vlaneseq
    %v163 = vshrl.u32 %v162, 7
    %v164 = vsub.s32 0, %v163
    %v165 = vrot.slane %v160, %v164
    %v183 = vunpack.c.l.b16 %v144
    %v184 = vunpack.c.l.b16 %v145
    %v185 = vunpack.c.l.b16 %v146
    %v186 = vunpack.c.l.b16 %v147
    %v187 = vunpack.c.l.b16 %v148
    %v188 = vunpack.c.l.b16 %v149
    %v189 = vunpack.c.l.b16 %v150
    %v190 = vunpack.c.l.b16 %v151
    %v191 = vunpack.c.l.b16 %v152
    %v192 = vunpack.c.l.b16 %v153
    %v193 = vunpack.c.l.b16 %v154
    %v194 = vunpack.c.l.b16 %v155
    %v195 = vunpack.c.l.b16 %v156
    %v196 = vunpack.c.l.b16 %v157
    %v197 = vunpack.c.l.b16 %v158
    %v198 = vunpack.c.l.b16 %v159
    %v199 = vpack.c.b16 %v184, %v183
    %v200 = vpack.c.b16 %v186, %v185
    %v201 = vpack.c.b16 %v188, %v187
    %v202 = vpack.c.b16 %v190, %v189
    %v203 = vpack.c.b16 %v192, %v191
    %v204 = vpack.c.b16 %v194, %v193
    %v205 = vpack.c.b16 %v196, %v195
    %v206 = vpack.c.b16 %v198, %v197
    %215 = vmatprep.subr.bf16.mxu0 0
    %216 = vmatpush1.bf16.msra.mxu0 %v199
    %217 = vmatprep.subr.bf16.mxu0 0
    %218 = vmatpush1.bf16.msra.mxu0 %v200
    %219 = vmatprep.subr.bf16.mxu0 0
    %220 = vmatpush1.bf16.msra.mxu0 %v201
    %221 = vmatprep.subr.bf16.mxu0 0
    %222 = vmatpush1.bf16.msra.mxu0 %v202
    %223 = vmatprep.subr.bf16.mxu0 0
    %224 = vmatpush1.bf16.msra.mxu0 %v203
    %225 = vmatprep.subr.bf16.mxu0 0
    %226 = vmatpush1.bf16.msra.mxu0 %v204
    %227 = vmatprep.subr.bf16.mxu0 0
    %228 = vmatpush1.bf16.msra.mxu0 %v205
    %229 = vmatprep.subr.bf16.mxu0 0
    %230 = vmatpush1.bf16.msra.mxu0 %v206
    %231 = vmatprep.subr.bf16.mxu0 0
    %232 = vmatpush1.bf16.msra.mxu0 0
    %233 = vmatprep.subr.bf16.mxu0 0
    %234 = vmatpush1.bf16.msra.mxu0 0
    %235 = vmatprep.subr.bf16.mxu0 0
    %236 = vmatpush1.bf16.msra.mxu0 0
    %237 = vmatprep.subr.bf16.mxu0 0
    %238 = vmatpush1.bf16.msra.mxu0 0
    %239 = vmatprep.subr.bf16.mxu0 0
    %240 = vmatpush1.bf16.msra.mxu0 0
    %241 = vmatprep.subr.bf16.mxu0 0
    %242 = vmatpush1.bf16.msra.mxu0 0
    %243 = vmatprep.subr.bf16.mxu0 0
    %244 = vmatpush1.bf16.msra.mxu0 0
    %245 = vmatprep.subr.bf16.mxu0 0
    %246 = vmatpush1.bf16.msra.mxu0 0
    %247 = vmatprep.mubr.bf16.mxu0 0
    %248 = vmatmul.mubr.bf16.gmra.mrb[0].mxu0 %v143
    %v249 = vpop.f32.mrb[0].mxu0
    %v250 = vadd.f32 %v165, %v249
    %v251 = vpop.f32.mrb[0].mxu0
    %v252 = vpop.f32.mrb[0].mxu0
    %v253 = vpop.f32.mrb[0].mxu0
    %254 = vdwg.mxu0
    %v255 = vpack.c.bf16 %v250, %v250
    %v256 = vtanh.bf16.pop %v255
    %v257 = vld [vmem:[#allocation8] sm:$0xf]
    %v258 = vld [vmem:[#allocation8 + $0x4] sm:$0xf]
    %v259 = vld [vmem:[#allocation8 + $0x8] sm:$0xf]
    %v260 = vld [vmem:[#allocation8 + $0xc] sm:$0xf]
    %v261 = vld [vmem:[#allocation8 + $0x10] sm:$0xf]
    %v262 = vld [vmem:[#allocation8 + $0x14] sm:$0xf]
    %v263 = vld [vmem:[#allocation8 + $0x18] sm:$0xf]
    %v264 = vld [vmem:[#allocation8 + $0x1c] sm:$0xf]
    %v265 = vld [vmem:[#allocation8 + $0x20] sm:$0xf]
    %v266 = vld [vmem:[#allocation8 + $0x24] sm:$0xf]
    %v267 = vld [vmem:[#allocation8 + $0x28] sm:$0xf]
    %v268 = vld [vmem:[#allocation8 + $0x2c] sm:$0xf]
    %v269 = vld [vmem:[#allocation8 + $0x30] sm:$0xf]
    %v270 = vld [vmem:[#allocation8 + $0x34] sm:$0xf]
    %v271 = vld [vmem:[#allocation8 + $0x38] sm:$0xf]
    %v272 = vld [vmem:[#allocation8 + $0x3c] sm:$0xf]
    %v273 = vld [vmem:[%s6] sm:$0x1]
    %v275 = vlaneseq
    %v276 = vshrl.u32 %v275, 7
    %v277 = vsub.s32 0, %v276
    %v278 = vrot.slane %v273, %v277
    %v296 = vunpack.c.l.b16 %v257
    %v297 = vunpack.c.l.b16 %v258
    %v298 = vunpack.c.l.b16 %v259
    %v299 = vunpack.c.l.b16 %v260
    %v300 = vunpack.c.l.b16 %v261
    %v301 = vunpack.c.l.b16 %v262
    %v302 = vunpack.c.l.b16 %v263
    %v303 = vunpack.c.l.b16 %v264
    %v304 = vunpack.c.l.b16 %v265
    %v305 = vunpack.c.l.b16 %v266
    %v306 = vunpack.c.l.b16 %v267
    %v307 = vunpack.c.l.b16 %v268
    %v308 = vunpack.c.l.b16 %v269
    %v309 = vunpack.c.l.b16 %v270
    %v310 = vunpack.c.l.b16 %v271
    %v311 = vunpack.c.l.b16 %v272
    %v312 = vpack.c.b16 %v297, %v296
    %v313 = vpack.c.b16 %v299, %v298
    %v314 = vpack.c.b16 %v301, %v300
    %v315 = vpack.c.b16 %v303, %v302
    %v316 = vpack.c.b16 %v305, %v304
    %v317 = vpack.c.b16 %v307, %v306
    %v318 = vpack.c.b16 %v309, %v308
    %v319 = vpack.c.b16 %v311, %v310
    %328 = vmatprep.subr.bf16.mxu0 0
    %329 = vmatpush1.bf16.msra.mxu0 %v312
    %330 = vmatprep.subr.bf16.mxu0 0
    %331 = vmatpush1.bf16.msra.mxu0 %v313
    %332 = vmatprep.subr.bf16.mxu0 0
    %333 = vmatpush1.bf16.msra.mxu0 %v314
    %334 = vmatprep.subr.bf16.mxu0 0
    %335 = vmatpush1.bf16.msra.mxu0 %v315
    %336 = vmatprep.subr.bf16.mxu0 0
    %337 = vmatpush1.bf16.msra.mxu0 %v316
    %338 = vmatprep.subr.bf16.mxu0 0
    %339 = vmatpush1.bf16.msra.mxu0 %v317
    %340 = vmatprep.subr.bf16.mxu0 0
    %341 = vmatpush1.bf16.msra.mxu0 %v318
    %342 = vmatprep.subr.bf16.mxu0 0
    %343 = vmatpush1.bf16.msra.mxu0 %v319
    %344 = vmatprep.subr.bf16.mxu0 0
    %345 = vmatpush1.bf16.msra.mxu0 0
    %346 = vmatprep.subr.bf16.mxu0 0
    %347 = vmatpush1.bf16.msra.mxu0 0
    %348 = vmatprep.subr.bf16.mxu0 0
    %349 = vmatpush1.bf16.msra.mxu0 0
    %350 = vmatprep.subr.bf16.mxu0 0
    %351 = vmatpush1.bf16.msra.mxu0 0
    %352 = vmatprep.subr.bf16.mxu0 0
    %353 = vmatpush1.bf16.msra.mxu0 0
    %354 = vmatprep.subr.bf16.mxu0 0
    %355 = vmatpush1.bf16.msra.mxu0 0
    %356 = vmatprep.subr.bf16.mxu0 0
    %357 = vmatpush1.bf16.msra.mxu0 0
    %358 = vmatprep.subr.bf16.mxu0 0
    %359 = vmatpush1.bf16.msra.mxu0 0
    %360 = vmatprep.mubr.bf16.mxu0 0
    %361 = vmatmul.mubr.bf16.gmra.mrb[0].mxu0 %v256
    %v362 = vpop.f32.mrb[0].mxu0
    %v363 = vadd.f32 %v278, %v362
    %v364 = vpop.f32.mrb[0].mxu0
    %v365 = vpop.f32.mrb[0].mxu0
    %v366 = vpop.f32.mrb[0].mxu0
    %367 = vdwg.mxu0
    %368 = vst [vmem:[#allocation10] sm:$0xff] %v363
    // Predicated region
    $region46: #{_forward_impl.1} parent=1 // pred_check
      _
    $region47: #{_forward_impl.1} parent=1 // pred_check_branch
      %370 = sbr.rel (0) target = $region49
    $region48: #{_forward_impl.1} parent=1 // pred_region
      %s372 = ssub.s32 128, 128
      %373 = vsyncadd [#allocation4], %s372
      %s375 = sshll.u32 [#allocation10], 4
      %s376 = int_to_ptr.vmem [resolvable:$true] %s375
      %378 = dma.vmem_to_hbm [thread:$0]  %s376, 128, %s7, [#allocation4]
    $region49: #{_forward_impl.1} parent=1 // pred_fallthru
      _
    // Predicated region
    $region50: #{_forward_impl.1} parent=1 // pred_check
      _
    $region51: #{_forward_impl.1} parent=1 // pred_check_branch
      %380 = sbr.rel (0) target = $region53
    $region52: #{_forward_impl.1} parent=1 // pred_region
      %381 = dma.done [#allocation4], 128
    $region53: #{_forward_impl.1} parent=1 // pred_fallthru
      _
    %382 = vsyncpa [#allocation3], 1
    %383 = vsyncpa [#allocation6], 1
    %384 = vsyncpa [#allocation9], 1
    %385 = vsyncpa [#allocation4], 1

</llo_original>
